<compile_context>
chip_gen: v7x
topology: tpu7x:2x2x1
jax: 0.10.0
libtpu: 0.0.40
codegen_flags: <defaults>
</compile_context>

<pallas_src>
import jax
import jax.numpy as jnp
from jax.experimental import pallas as pl
from jax.experimental.pallas import tpu as pltpu

LANES = 128  # lane width for the lane-dense packed output


def reward_kernel(h_ref, wdiff_ref, correct_ref, out_ref):
    # h_ref:       VMEM [tb, H]      last-token hidden states (bf16 or f32)
    # wdiff_ref:   VMEM f32[1, H]    W[:, yes_id] - W[:, no_id]
    # correct_ref: VMEM f32[tb, 1]   answer_was_correct as 0.0 / 1.0
    # out_ref:     VMEM f32[tb, 128] lane 0 = prob_yes, lane 1 = score
    tb = h_ref.shape[0]
    lanes = out_ref.shape[1]

    # d = h_last . (w_yes - w_no): VPU multiply + XLU cross-lane reduce,
    # accumulated in f32 regardless of the activation dtype.
    h = h_ref[...].astype(jnp.float32)                        # (tb, H)
    d = jnp.sum(h * wdiff_ref[...], axis=-1, keepdims=True)   # (tb, 1)

    # prob_yes = p_yes / (p_yes + p_no) = sigmoid(d), exact f32.
    # exp(-d) saturates to +inf / 0 for extreme d, giving prob 0 / 1 cleanly.
    prob_yes = 1.0 / (1.0 + jnp.exp(-d))                      # (tb, 1)

    # q = probability mass the model puts on the *true* correctness label;
    # agree branch (q > 0.5) -> +q, disagree (incl. tie) -> q - 1 = -(1 - q).
    c = correct_ref[...]                                      # (tb, 1) in {0, 1}
    q = prob_yes * c + (1.0 - prob_yes) * (1.0 - c)
    score = jnp.where(q > 0.5, q, q - 1.0)

    # Single lane-dense packed output (unmasked vst); host reads lanes 0 and 1.
    lane = jax.lax.broadcasted_iota(jnp.int32, (tb, lanes), 1)
    out_ref[...] = jnp.where(lane == 0, prob_yes,
                             jnp.where(lane == 1, score, 0.0))


def reward_model_forward(hidden, lm_head_w, yesno_idx, answer_was_correct, *, tb=None):
    """Pallas-backed equivalent of RewardModel.forward's tensor math.

    hidden:             [B, S, H] LM hidden states (bf16 or f32) — synthetic stand-in
    lm_head_w:          f32[H, V] lm_head projection
    yesno_idx:          i32[2]    [yes_token_id, no_token_id]
    answer_was_correct: bool[B]
    returns (scores f32[B], corrects bool[B], probs f32[B])

    tb: batch tile.  Default B (grid=1) is best on v5e/v6e (single TC); on v7x
    pick tb ≈ round_up(B/2, 16) so both TensorCores get work, and keep
    2*tb*H*itemsize within the scoped VMEM budget (32 MiB default on v7x).
    """
    B, S, H = hidden.shape
    assert H % LANES == 0, "hidden size must be a multiple of 128 (lane width)"
    if tb is None:
        tb = B
    assert B % tb == 0

    # Free row-major view (no astype, no copy); the h BlockSpec below selects
    # exactly hidden[:, -1, :] as block (b, S-1), so only the last token of
    # each example is ever DMA'd out of HBM.
    hidden2d = hidden.reshape(B, S * H)

    # Only two lm_head columns are read; their difference is all the kernel
    # needs.  Static per model/tokenizer — in a real deployment hoist/cache
    # this (ideally from a (V, H)-layout weight so the two reads are contiguous).
    w_diff = (lm_head_w[:, yesno_idx[0]] - lm_head_w[:, yesno_idx[1]])
    w_diff = w_diff.astype(jnp.float32).reshape(1, H)

    correct_f = answer_was_correct.astype(jnp.float32).reshape(B, 1)

    out = pl.pallas_call(
        reward_kernel,
        grid=(B // tb,),
        in_specs=[
            pl.BlockSpec((tb, H), lambda b: (b, S - 1)),   # last-token rows only
            pl.BlockSpec((1, H), lambda b: (0, 0)),        # w_diff (resident)
            pl.BlockSpec((tb, 1), lambda b: (b, 0)),       # correctness flags
        ],
        out_specs=pl.BlockSpec((tb, LANES), lambda b: (b, 0)),
        out_shape=jax.ShapeDtypeStruct((B, LANES), jnp.float32),
        compiler_params=pltpu.CompilerParams(
            dimension_semantics=("parallel",),   # v7x: shard batch tiles across both TCs
        ),
    )(hidden2d, w_diff, correct_f)

    return out[:, 1], answer_was_correct, out[:, 0]


def _reference(hidden, lm_head_w, yesno_idx, answer_was_correct):
    """Plain-JAX reference mirroring the PyTorch math (full softmax path)."""
    h_last = hidden[:, -1, :].astype(jnp.float32)
    logits = jnp.dot(h_last, lm_head_w.astype(jnp.float32),
                     precision=jax.lax.Precision.HIGHEST)
    probs_full = jnp.exp(jax.nn.log_softmax(logits, axis=-1))
    p_yes = probs_full[:, yesno_idx[0]]
    p_no = probs_full[:, yesno_idx[1]]
    prob_yes = p_yes / (p_yes + p_no)
    c = answer_was_correct.astype(jnp.float32)
    agree = ((prob_yes > 0.5) & (c > 0.5)) | ((prob_yes < 0.5) & (c <= 0.5))
    s_agree = prob_yes * c + (1.0 - prob_yes) * (1.0 - c)
    s_dis = -(prob_yes * (1.0 - c) + (1.0 - prob_yes) * c)
    return jnp.where(agree, s_agree, s_dis), prob_yes


if __name__ == "__main__":
    # Small synthetic shapes; H/V kept 128-aligned for lane friendliness.
    B, S, H, V = 2, 8, 256, 512

    key = jax.random.PRNGKey(0)
    k_h, k_w = jax.random.split(key)
    # bf16 activations (what an LM body typically emits); kernel is dtype-native.
    hidden = jax.random.normal(k_h, (B, S, H), dtype=jnp.float32).astype(jnp.bfloat16)
    lm_head_w = 0.1 * jax.random.normal(k_w, (H, V), dtype=jnp.float32)

    # Stand-ins for tokenizer.encode("yes")[0] / tokenizer.encode("no")[0].
    yesno_idx = jnp.array([7, 42], dtype=jnp.int32)
    answer_was_correct = jnp.array([True, False])

    scores, corrects, probs = reward_model_forward(
        hidden, lm_head_w, yesno_idx, answer_was_correct
    )
    jax.block_until_ready((scores, probs))

    ref_scores, ref_probs = _reference(hidden, lm_head_w, yesno_idx, answer_was_correct)
    assert jnp.allclose(probs, ref_probs, atol=1e-3, rtol=1e-3), (probs, ref_probs)
    assert jnp.allclose(scores, ref_scores, atol=1e-3, rtol=1e-3), (scores, ref_scores)
    assert bool(jnp.all(corrects == answer_was_correct))

    print("KERNEL_OK")
</pallas_src>

<mosaic_0001>
module attributes {stable_mosaic.version = 11 : i64} {
  func.func @reward_kernel(%arg0: i32, %arg1: memref<2x256xbf16, #tpu.memory_space<vmem>>, %arg2: memref<1x256xf32, #tpu.memory_space<vmem>>, %arg3: memref<2x1xf32, #tpu.memory_space<vmem>>, %arg4: memref<2x128xf32, #tpu.memory_space<vmem>>) attributes {dimension_semantics = [#tpu.dimension_semantics<parallel>], iteration_bounds = array<i64: 1>, scalar_prefetch = 0 : i64, scratch_operands = 0 : i64, tpu.core_type = #tpu.core_type<tc>, window_params = [{transform_indices = @transform_0, window_bounds = array<i64: 2, 256>}, {pipeline_mode = #tpu.pipeline_mode<synchronous>, transform_indices = @transform_1, window_bounds = array<i64: 1, 256>}, {transform_indices = @transform_2, window_bounds = array<i64: 2, 1>}, {transform_indices = @transform_3, window_bounds = array<i64: 2, 128>}]} {
    %c0 = arith.constant 0 : index
    %c0_0 = arith.constant 0 : index
    %0 = vector.load %arg1[%c0, %c0_0] : memref<2x256xbf16, #tpu.memory_space<vmem>>, vector<2x256xbf16>
    %1 = arith.extf %0 : vector<2x256xbf16> to vector<2x256xf32>
    %c0_1 = arith.constant 0 : index
    %c0_2 = arith.constant 0 : index
    %2 = vector.load %arg2[%c0_1, %c0_2] : memref<1x256xf32, #tpu.memory_space<vmem>>, vector<1x256xf32>
    %3 = vector.broadcast %2 : vector<1x256xf32> to vector<2x256xf32>
    %4 = arith.mulf %1, %3 : vector<2x256xf32>
    %cst = arith.constant dense<0.000000e+00> : vector<2xf32>
    %5 = vector.multi_reduction <add>, %4, %cst [1] : vector<2x256xf32> to vector<2xf32>
    %6 = vector.shape_cast %5 : vector<2xf32> to vector<2x1xf32>
    %cst_3 = arith.constant 0.000000e+00 : f32
    %7 = vector.broadcast %cst_3 : f32 to vector<2x1xf32>
    %8 = arith.subf %7, %6 : vector<2x1xf32>
    %9 = math.exp %8 : vector<2x1xf32>
    %cst_4 = arith.constant 1.000000e+00 : f32
    %10 = vector.broadcast %cst_4 : f32 to vector<2x1xf32>
    %11 = arith.addf %10, %9 : vector<2x1xf32>
    %cst_5 = arith.constant 1.000000e+00 : f32
    %12 = vector.broadcast %cst_5 : f32 to vector<2x1xf32>
    %13 = arith.divf %12, %11 : vector<2x1xf32>
    %c0_6 = arith.constant 0 : index
    %c0_7 = arith.constant 0 : index
    %14 = vector.load %arg3[%c0_6, %c0_7] : memref<2x1xf32, #tpu.memory_space<vmem>>, vector<2x1xf32>
    %15 = arith.mulf %13, %14 : vector<2x1xf32>
    %cst_8 = arith.constant 1.000000e+00 : f32
    %16 = vector.broadcast %cst_8 : f32 to vector<2x1xf32>
    %17 = arith.subf %16, %13 : vector<2x1xf32>
    %cst_9 = arith.constant 1.000000e+00 : f32
    %18 = vector.broadcast %cst_9 : f32 to vector<2x1xf32>
    %19 = arith.subf %18, %14 : vector<2x1xf32>
    %20 = arith.mulf %17, %19 : vector<2x1xf32>
    %21 = arith.addf %15, %20 : vector<2x1xf32>
    %cst_10 = arith.constant 5.000000e-01 : f32
    %22 = vector.broadcast %cst_10 : f32 to vector<2x1xf32>
    %23 = arith.cmpf ogt, %21, %22 : vector<2x1xf32>
    %cst_11 = arith.constant 1.000000e+00 : f32
    %24 = vector.broadcast %cst_11 : f32 to vector<2x1xf32>
    %25 = arith.subf %21, %24 : vector<2x1xf32>
    %26 = arith.select %23, %21, %25 : vector<2x1xi1>, vector<2x1xf32>
    %27 = tpu.iota {dimensions = array<i32: 1>} : vector<2x128xi32>
    %c0_i32 = arith.constant 0 : i32
    %28 = vector.broadcast %c0_i32 : i32 to vector<2x128xi32>
    %29 = arith.cmpi eq, %27, %28 : vector<2x128xi32>
    %c1_i32 = arith.constant 1 : i32
    %30 = vector.broadcast %c1_i32 : i32 to vector<2x128xi32>
    %31 = arith.cmpi eq, %27, %30 : vector<2x128xi32>
    %cst_12 = arith.constant 0.000000e+00 : f32
    %32 = vector.shape_cast %26 : vector<2x1xf32> to vector<2x1xf32>
    %33 = vector.broadcast %32 : vector<2x1xf32> to vector<2x128xf32>
    %34 = vector.broadcast %cst_12 : f32 to vector<2x128xf32>
    %35 = arith.select %31, %33, %34 : vector<2x128xi1>, vector<2x128xf32>
    %36 = vector.shape_cast %13 : vector<2x1xf32> to vector<2x1xf32>
    %37 = vector.broadcast %36 : vector<2x1xf32> to vector<2x128xf32>
    %38 = arith.select %29, %37, %35 : vector<2x128xi1>, vector<2x128xf32>
    %c0_13 = arith.constant 0 : index
    %c0_14 = arith.constant 0 : index
    %39 = vector.load %arg4[%c0_13, %c0_14] : memref<2x128xf32, #tpu.memory_space<vmem>>, vector<2x128xf32>
    tpu.vector_store %arg4[%c0_13, %c0_14], %38 {strides = array<i32>} : memref<2x128xf32, #tpu.memory_space<vmem>>, vector<2x128xf32>,
    return
  }
  func.func @transform_0(%arg0: i32) -> (i32, i32) {
    %c7_i32 = arith.constant 7 : i32
    %c0_i32 = arith.constant 0 : i32
    return %arg0, %c7_i32 : i32, i32
  }
  func.func @transform_1(%arg0: i32) -> (i32, i32) {
    %c0_i32 = arith.constant 0 : i32
    %c0_i32_0 = arith.constant 0 : i32
    %c0_i32_1 = arith.constant 0 : i32
    return %c0_i32, %c0_i32_0 : i32, i32
  }
  func.func @transform_2(%arg0: i32) -> (i32, i32) {
    %c0_i32 = arith.constant 0 : i32
    %c0_i32_0 = arith.constant 0 : i32
    return %arg0, %c0_i32 : i32, i32
  }
  func.func @transform_3(%arg0: i32) -> (i32, i32) {
    %c0_i32 = arith.constant 0 : i32
    %c0_i32_0 = arith.constant 0 : i32
    return %arg0, %c0_i32 : i32, i32
  }
}

</mosaic_0001>

<llo_original>
// kernel: tpu_custom_call.1
$region0: #{tpu_custom_call.1}
  #allocation0 [shape = 'u32[]', space=smem, size = 0x4, offset = 0x4, fixed_abs, tag = 'smem constant byte address 0x4 - core index']
  #allocation1 [shape = 'u32[144,128]{1,0:T(1,128)}', space=vmem, size = 0x12000, scoped, tag = 'internal scratch']
  %s0 = inlined_call_operand.hbm [shape: bf16[2,2048], index: 0, kind: input, shape index: {}]
  %s1 = inlined_call_operand.vmem [shape: f32[1,256], index: 1, kind: input, shape index: {}]
  %s2 = inlined_call_operand.vmem [shape: f32[2,1], index: 2, kind: input, shape index: {}]
  %s3 = inlined_call_operand.hbm [shape: f32[2,128], index: 3, kind: output, shape index: {}]
  %s4 = sld [smem:[#allocation0]]
  $region26: #{tpu_custom_call.1} parent=0
    _
  %s6 = ssub.s32 1, %s4
  %s7 = scalar_select 0, %s6, %s4
  $region1: #{tpu_custom_call.1} parent=0
    #allocation2 [shape = 'u8[1024]{0}', space=vmem, size = 0x400, scoped, tag = 'input window, operand 0, single buffered']
    #allocation3 [shape = 's32[1]{0}', space=sflag, size = 0x4, scoped, tag = 'scoped memory for tpu_custom_call.1']
    #allocation4 [shape = 's32[1]{0}', space=sflag, size = 0x4, scoped, tag = 'scoped memory for tpu_custom_call.1']
    #allocation5 [shape = 'u8[1024]{0}', space=vmem, size = 0x400, scoped, tag = 'output window, operand 0, single buffered']
    %8 = vsyncpa [#allocation3], 0
    %9 = vsyncpa [#allocation4], 0
    // Predicated region
    $region2: #{tpu_custom_call.1} parent=1 // pred_check
      _
    $region3: #{tpu_custom_call.1} parent=1 // pred_check_branch
      %11 = sbr.rel (0) target = $region5
    $region4: #{tpu_custom_call.1} parent=1 // pred_region
      %s13 = ssub.s32 32, 32
      %14 = vsyncadd [#allocation3], %s13
      %s15 = scalar_lea.hbm %s0, 224
      %s17 = sshll.u32 [#allocation2], 4
      %s18 = int_to_ptr.vmem [resolvable:$true] %s17
      %20 = dma.hbm_to_vmem [thread:$0]  %s15, 32, %s18, [#allocation3]
    $region5: #{tpu_custom_call.1} parent=1 // pred_fallthru
      _
    // Predicated region
    $region6: #{tpu_custom_call.1} parent=1 // pred_check
      _
    $region7: #{tpu_custom_call.1} parent=1 // pred_check_branch
      %22 = sbr.rel (0) target = $region9
    $region8: #{tpu_custom_call.1} parent=1 // pred_region
      _
    $region9: #{tpu_custom_call.1} parent=1 // pred_fallthru
      _
    // Predicated region
    $region10: #{tpu_custom_call.1} parent=1 // pred_check
      _
    $region11: #{tpu_custom_call.1} parent=1 // pred_check_branch
      %24 = sbr.rel (0) target = $region13
    $region12: #{tpu_custom_call.1} parent=1 // pred_region
      _
    $region13: #{tpu_custom_call.1} parent=1 // pred_fallthru
      _
    // Predicated region
    $region14: #{tpu_custom_call.1} parent=1 // pred_check
      _
    $region15: #{tpu_custom_call.1} parent=1 // pred_check_branch
      %26 = sbr.rel (0) target = $region17
    $region16: #{tpu_custom_call.1} parent=1 // pred_region
      %27 = dma.done [#allocation3], 32
    $region17: #{tpu_custom_call.1} parent=1 // pred_fallthru
      _
    %v28 = vld [vmem:[#allocation2] sm:$0x3]
    %v29 = vunpack.c.l.bf16 %v28
    %v30 = vld [vmem:[%s1] sm:$0x3]
    %v32 = vlaneseq
    %v33 = vshrl.u32 %v32, 7
    %v34 = vsub.s32 0, %v33
    %v35 = vrot.slane %v30, %v34
    %v36 = vlaneseq
    %v37 = vshrl.u32 %v36, 7
    %v38 = vsub.s32 1, %v37
    %v39 = vrot.slane %v30, %v38
    %v40 = vcombine.low %v35, %v39
    %v42 = vunpack.c.l.s4 1983009808
    %v43 = vunpack.c.0.s8 %v42
    %v44 = vlaneseq
    %v45 = vshrl.u32 %v44, 7
    %v46 = vsub.s32 %v43, %v45
    %v47 = vrot.slane %v40, %v46
    %v49 = vmul.f32 %v29, %v47
    %v52 = vunpack.c.l.s4 1983009808
    %v53 = vunpack.c.0.s8 %v52
    %v54 = vlaneseq
    %v55 = vshrl.u32 %v54, 7
    %v56 = vsub.s32 %v53, %v55
    %v57 = vrot.slane %v49, %v56
    %v58 = vcombine.high %v57, %v57
    %vm61 = vcmask 1041408
    %v62 = vsel %vm61, %v57, 0.0
    %v63 = vsel %vm61, %v58, 0.0
    %v64 = vadd.f32 %v62, %v63
    %65 = vadd.xlane.f32.xlu0 %v64
    %v66 = vpop.xlane.xlu0 %65
    %v67 = vsub.f32 0.0, %v66
    %v68 = vmul.f32 %v67, 1.442695
    %v69 = vpow.pop %v68
    %v70 = vadd.f32 %v69, 1.0
    %v71 = vrcp.pop %v70
    %v72 = vmul.f32 1.0, %v71
    %v73 = vld [vmem:[%s2] sm:$0x3]
    %v74 = vmul.f32 %v72, %v73
    %v75 = vsub.f32 1.0, %v72
    %v76 = vsub.f32 1.0, %v73
    %v77 = vmul.f32 %v75, %v76
    %v78 = vadd.f32 %v74, %v77
    %vm79 = vcmp.gt.f32.partialorder %v78, 0.5
    %v80 = vsub.f32 %v78, 1.0
    %v81 = vsel %vm79, %v78, %v80
    %v82 = vlaneseq
    %v83 = vand.u32 %v82, 127
    %vm84 = vcmp.eq.s32.totalorder %v83, 0
    %vm85 = vcmp.eq.s32.totalorder %v83, 1
    %87 = vset.pattern.permute.xlu0 0
    %88 = vperm.xlu0 %87, %v81
    %v89 = vpop.permute.xlu0 %88
    %v91 = vsel %vm85, %v89, 0.0
    %v92 = vsel %vm84, %v72, %v91
    %93 = vst [vmem:[#allocation5] sm:$0x3] %v92
    // Predicated region
    $region18: #{tpu_custom_call.1} parent=1 // pred_check
      _
    $region19: #{tpu_custom_call.1} parent=1 // pred_check_branch
      %95 = sbr.rel (0) target = $region21
    $region20: #{tpu_custom_call.1} parent=1 // pred_region
      %s97 = ssub.s32 32, 32
      %98 = vsyncadd [#allocation4], %s97
      %s100 = sshll.u32 [#allocation5], 4
      %s101 = int_to_ptr.vmem [resolvable:$true] %s100
      %103 = dma.vmem_to_hbm [thread:$0]  %s101, 32, %s3, [#allocation4]
    $region21: #{tpu_custom_call.1} parent=1 // pred_fallthru
      _
    // Predicated region
    $region22: #{tpu_custom_call.1} parent=1 // pred_check
      _
    $region23: #{tpu_custom_call.1} parent=1 // pred_check_branch
      %105 = sbr.rel (0) target = $region25
    $region24: #{tpu_custom_call.1} parent=1 // pred_region
      %106 = dma.done [#allocation4], 32
    $region25: #{tpu_custom_call.1} parent=1 // pred_fallthru
      _
    %107 = vsyncpa [#allocation3], 1
    %108 = vsyncpa [#allocation4], 1

</llo_original>
